<compile_context>
chip_gen: v7x
topology: tpu7x:2x2x1
jax: 0.10.0
libtpu: 0.0.40
codegen_flags: <defaults>
</compile_context>

<pallas_src>
import functools

import jax
import jax.numpy as jnp
from jax.experimental import pallas as pl
from jax.experimental.pallas import tpu as pltpu  # noqa: F401  (TPU backend)

# ---------------------------------------------------------------------------
# Synthetic primitive sets (the original code references global PRIMITIVES_*
# lists defined elsewhere; representative ones here).
# ---------------------------------------------------------------------------
PRIMITIVES_UNARY = ["none", "identity", "negate", "abs", "square", "sqrt", "sign", "relu"]
PRIMITIVES_ASSIST = ["none", "1", "2", "0.5", "-1", "0.1"]
PRIMITIVES_BINARY = ["add", "sub", "mul", "div", "max"]
PRIMITIVES_TRIPLE = ["add3", "mul3", "mean3"]


# ---------------------------------------------------------------------------
# Pallas kernels.
# ---------------------------------------------------------------------------
def _rnn_controller_kernel(packed_ref, out_ref, *, num_action, space):
    # packed_ref: (S+2, S) slab:
    #   rows [0, S)     : W_sum = W_ih^T + W_hh^T   (fused recurrence weight)
    #   row  S          : pre0  = x0 @ W_ih^T + b_sum  (step-0 pre-activation)
    #   row  S+1        : b_sum = b_ih + b_hh
    # out_ref: (num_action, S)  row i = hidden state after step i
    S = space
    packed = packed_ref[...]                     # single tiny load
    w_sum = packed[0:S, :]                       # (S, S)
    pre0 = packed[S:S + 1, :]                    # (1, S)
    b_sum = packed[S + 1:S + 2, :]               # (1, S)

    h = jnp.tanh(pre0)                           # step 0
    hs = [h]
    # Static unroll: num_action is small (5 or 7); keeps the serial
    # dot -> add -> tanh chain fully visible to the scheduler.
    for _ in range(1, num_action):
        h = jnp.tanh(
            jnp.dot(h, w_sum, preferred_element_type=jnp.float32) + b_sum)
        hs.append(h)

    # One unmasked full-block store instead of num_action masked row stores.
    out_ref[...] = jnp.concatenate(hs, axis=0)


def _pure_controller_kernel(alpha_ref, out_ref):
    # 'PURE' branch: arch parameters are passed through unchanged.
    # One launch over the stacked (num_action, S) array.
    out_ref[...] = alpha_ref[...]


# ---------------------------------------------------------------------------
# pallas_call wrappers (jitted once per controller instance).
# ---------------------------------------------------------------------------
def _run_rnn_kernel(packed, *, num_action, space):
    kernel = functools.partial(_rnn_controller_kernel,
                               num_action=num_action, space=space)
    return pl.pallas_call(
        kernel,
        out_shape=jax.ShapeDtypeStruct((num_action, space), jnp.float32),
        in_specs=[pl.BlockSpec((space + 2, space), lambda: (0, 0))],
        out_specs=pl.BlockSpec((num_action, space), lambda: (0, 0)),
    )(packed)


def _run_pure_kernel(alphas_stacked):
    n, s = alphas_stacked.shape
    return pl.pallas_call(
        _pure_controller_kernel,
        out_shape=jax.ShapeDtypeStruct((n, s), jnp.float32),
        in_specs=[pl.BlockSpec((n, s), lambda: (0, 0))],
        out_specs=pl.BlockSpec((n, s), lambda: (0, 0)),
    )(alphas_stacked)


# ---------------------------------------------------------------------------
# Python-side Controller mirroring the PyTorch module.
# ---------------------------------------------------------------------------
class ControllerPallas:
    def __init__(self, choice, triple=False, seed=0):
        self.triple = triple
        if triple:
            self.space = max(len(PRIMITIVES_UNARY), len(PRIMITIVES_ASSIST),
                             len(PRIMITIVES_TRIPLE))
            self.num_action = 7
        else:
            self.space = max(len(PRIMITIVES_UNARY), len(PRIMITIVES_ASSIST),
                             len(PRIMITIVES_BINARY))
            self.num_action = 5
        self.choice = choice
        S = self.space

        if choice == 'RNN':
            # nn.RNNCell default init: U(-1/sqrt(hidden), 1/sqrt(hidden))
            key = jax.random.PRNGKey(seed)
            k1, k2, k3, k4 = jax.random.split(key, 4)
            bound = 1.0 / float(jnp.sqrt(jnp.float32(S)))
            self.w_ih = jax.random.uniform(k1, (S, S), jnp.float32, -bound, bound)
            self.w_hh = jax.random.uniform(k2, (S, S), jnp.float32, -bound, bound)
            self.b_ih = jax.random.uniform(k3, (1, S), jnp.float32, -bound, bound)
            self.b_hh = jax.random.uniform(k4, (1, S), jnp.float32, -bound, bound)

            # ---- one-time operand preparation (no per-call transposes) ----
            x0 = jnp.ones((1, S), jnp.float32) / S / 10.0
            b_sum = self.b_ih + self.b_hh                     # (1, S)
            w_sum_t = (self.w_ih + self.w_hh).T               # (S, S) fused, pre-transposed
            pre0 = x0 @ self.w_ih.T + b_sum                   # (1, S) step-0 pre-activation
            # Single packed slab -> one input DMA into the kernel.
            self._packed = jnp.concatenate([w_sum_t, pre0, b_sum], axis=0)  # (S+2, S)

            self._rnn_forward = jax.jit(functools.partial(
                _run_rnn_kernel, num_action=self.num_action, space=S))
        elif choice == 'PURE':
            self._arch_parameters = [
                jnp.ones((1, S), jnp.float32) / S for _ in range(self.num_action)
            ]
            self._alphas_stacked = jnp.concatenate(self._arch_parameters, axis=0)
            self._pure_forward = jax.jit(_run_pure_kernel)

    def arch_parameters(self):
        return self._arch_parameters

    def forward_stacked(self):
        """Fast path: returns the (num_action, space) slab from one kernel launch."""
        if self.choice == 'RNN':
            return self._rnn_forward(self._packed)
        elif self.choice == 'PURE':
            return self._pure_forward(self._alphas_stacked)

    def __call__(self):
        # Matches the PyTorch return signature: a list of (1, space) tensors.
        out = self.forward_stacked()
        out = jax.block_until_ready(out)
        return [out[i:i + 1, :] for i in range(self.num_action)]


# ---------------------------------------------------------------------------
# Pure-JAX reference for the RNN branch (sanity check, unfused form).
# ---------------------------------------------------------------------------
def _rnn_reference(ctrl):
    S = ctrl.space
    x0 = jnp.ones((1, S), jnp.float32) / S / 10.0
    h = jnp.zeros((1, S), jnp.float32)
    outs = []
    for i in range(ctrl.num_action):
        inp = x0 if i == 0 else h
        h = jnp.tanh(inp @ ctrl.w_ih.T + ctrl.b_ih + h @ ctrl.w_hh.T + ctrl.b_hh)
        outs.append(h)
    return jnp.concatenate(outs, axis=0)


if __name__ == "__main__":
    # RNN controller branch (the compute-carrying path): single kernel launch.
    ctrl = ControllerPallas(choice='RNN', triple=False, seed=0)
    slab = jax.block_until_ready(ctrl.forward_stacked())
    assert slab.shape == (ctrl.num_action, ctrl.space)

    ref = _rnn_reference(ctrl)
    assert jnp.allclose(slab, ref, atol=1e-5, rtol=1e-5), (slab, ref)

    # List-returning path (PyTorch-compatible signature).
    inferences = ctrl()
    assert len(inferences) == ctrl.num_action
    for i, h in enumerate(inferences):
        assert h.shape == (1, ctrl.space)
        assert jnp.allclose(h, ref[i:i + 1, :], atol=1e-5, rtol=1e-5)

    # PURE branch: one launch over the stacked arch parameters.
    ctrl_pure = ControllerPallas(choice='PURE', triple=False, seed=0)
    pure_slab = jax.block_until_ready(ctrl_pure.forward_stacked())
    assert jnp.allclose(
        pure_slab,
        jnp.ones((ctrl_pure.num_action, ctrl_pure.space)) / ctrl_pure.space)

    print("KERNEL_OK")
</pallas_src>

<mosaic_0001>
module attributes {stable_mosaic.version = 11 : i64} {
  func.func @_rnn_controller_kernel(%arg0: memref<10x8xf32, #tpu.memory_space<vmem>>, %arg1: memref<5x8xf32, #tpu.memory_space<vmem>>) attributes {dimension_semantics = [], scalar_prefetch = 0 : i64, scratch_operands = 0 : i64, tpu.core_type = #tpu.core_type<tc>} {
    %c0 = arith.constant 0 : index
    %c0_0 = arith.constant 0 : index
    %0 = vector.load %arg0[%c0, %c0_0] : memref<10x8xf32, #tpu.memory_space<vmem>>, vector<10x8xf32>
    %1 = vector.extract_strided_slice %0 {offsets = [0, 0], sizes = [8, 8], strides = [1, 1]} : vector<10x8xf32> to vector<8x8xf32>
    %2 = vector.extract_strided_slice %0 {offsets = [8, 0], sizes = [1, 8], strides = [1, 1]} : vector<10x8xf32> to vector<1x8xf32>
    %3 = vector.extract_strided_slice %0 {offsets = [9, 0], sizes = [1, 8], strides = [1, 1]} : vector<10x8xf32> to vector<1x8xf32>
    %4 = math.tanh %2 : vector<1x8xf32>
    %cst = arith.constant dense<0.000000e+00> : vector<1x8xf32>
    %5 = tpu.matmul %4, %1, %cst {dimension_numbers = #tpu.dot_dimension_numbers<[1], [0], [0], [1], [0, 0, 1, 1], [], []>} : vector<1x8xf32>, vector<8x8xf32>, vector<1x8xf32> -> vector<1x8xf32>
    %6 = arith.addf %5, %3 : vector<1x8xf32>
    %7 = math.tanh %6 : vector<1x8xf32>
    %cst_1 = arith.constant dense<0.000000e+00> : vector<1x8xf32>
    %8 = tpu.matmul %7, %1, %cst_1 {dimension_numbers = #tpu.dot_dimension_numbers<[1], [0], [0], [1], [0, 0, 1, 1], [], []>} : vector<1x8xf32>, vector<8x8xf32>, vector<1x8xf32> -> vector<1x8xf32>
    %9 = arith.addf %8, %3 : vector<1x8xf32>
    %10 = math.tanh %9 : vector<1x8xf32>
    %cst_2 = arith.constant dense<0.000000e+00> : vector<1x8xf32>
    %11 = tpu.matmul %10, %1, %cst_2 {dimension_numbers = #tpu.dot_dimension_numbers<[1], [0], [0], [1], [0, 0, 1, 1], [], []>} : vector<1x8xf32>, vector<8x8xf32>, vector<1x8xf32> -> vector<1x8xf32>
    %12 = arith.addf %11, %3 : vector<1x8xf32>
    %13 = math.tanh %12 : vector<1x8xf32>
    %cst_3 = arith.constant dense<0.000000e+00> : vector<1x8xf32>
    %14 = tpu.matmul %13, %1, %cst_3 {dimension_numbers = #tpu.dot_dimension_numbers<[1], [0], [0], [1], [0, 0, 1, 1], [], []>} : vector<1x8xf32>, vector<8x8xf32>, vector<1x8xf32> -> vector<1x8xf32>
    %15 = arith.addf %14, %3 : vector<1x8xf32>
    %16 = math.tanh %15 : vector<1x8xf32>
    %17 = tpu.concatenate %4, %7, %10, %13, %16 in 0 : vector<1x8xf32>, vector<1x8xf32>, vector<1x8xf32>, vector<1x8xf32>, vector<1x8xf32> -> vector<5x8xf32>
    %c0_4 = arith.constant 0 : index
    %c0_5 = arith.constant 0 : index
    %18 = vector.load %arg1[%c0_4, %c0_5] : memref<5x8xf32, #tpu.memory_space<vmem>>, vector<5x8xf32>
    tpu.vector_store %arg1[%c0_4, %c0_5], %17 {strides = array<i32>} : memref<5x8xf32, #tpu.memory_space<vmem>>, vector<5x8xf32>,
    return
  }
}

</mosaic_0001>

<llo_original>
// kernel: _run_rnn_kernel.1
$region0: #{_run_rnn_kernel.1}
  #allocation0 [shape = 'u32[]', space=smem, size = 0x4, offset = 0x4, fixed_abs, tag = 'smem constant byte address 0x4 - core index']
  #allocation1 [shape = 'u32[144,128]{1,0:T(1,128)}', space=vmem, size = 0x12000, scoped, tag = 'internal scratch']
  %s0 = inlined_call_operand.vmem [shape: f32[10,8], index: 0, kind: input, shape index: {}]
  %s1 = inlined_call_operand.hbm [shape: f32[5,8], index: 1, kind: output, shape index: {}]
  %s2 = sld [smem:[#allocation0]]
  $region14: #{_run_rnn_kernel.1} parent=0
    _
  %s4 = ssub.s32 1, %s2
  %s5 = scalar_select 0, %s4, %s2
  $region1: #{_run_rnn_kernel.1} parent=0
    #allocation2 [shape = 'u8[4096]{0}', space=vmem, size = 0x1000, scoped, tag = 'output window, operand 0, single buffered']
    #allocation3 [shape = 's32[1]{0}', space=sflag, size = 0x4, scoped, tag = 'scoped memory for _run_rnn_kernel.1']
    %6 = vsyncpa [#allocation3], 0
    // Predicated region
    $region2: #{_run_rnn_kernel.1} parent=1 // pred_check
      _
    $region3: #{_run_rnn_kernel.1} parent=1 // pred_check_branch
      %8 = sbr.rel (0) target = $region5
    $region4: #{_run_rnn_kernel.1} parent=1 // pred_region
      _
    $region5: #{_run_rnn_kernel.1} parent=1 // pred_fallthru
      _
    %v9 = vld [vmem:[%s0] sm:$0xff]
    %v10 = vld [vmem:[%s0 + $0x8] sm:$0x3]
    %v11 = vtanh.pop %v10
    %v13 = vrot.slane %v10, 1
    %vm15 = vcmask 64512
    %v17 = vsel %vm15, %v11, 0
    %19 = vmatprep.subr.mxu0 0.0
    %20 = vmatpush1.msra.mxu0 %v9
    %21 = vmatprep.subr.mxu0 0.0
    %22 = vmatpush1.msra.mxu0 0.0
    %23 = vmatprep.subr.mxu0 0.0
    %24 = vmatpush1.msra.mxu0 0.0
    %25 = vmatprep.subr.mxu0 0.0
    %26 = vmatpush1.msra.mxu0 0.0
    %27 = vmatprep.subr.mxu0 0.0
    %28 = vmatpush1.msra.mxu0 0.0
    %29 = vmatprep.subr.mxu0 0.0
    %30 = vmatpush1.msra.mxu0 0.0
    %31 = vmatprep.subr.mxu0 0.0
    %32 = vmatpush1.msra.mxu0 0.0
    %33 = vmatprep.subr.mxu0 0.0
    %34 = vmatpush1.msra.mxu0 0.0
    %35 = vmatprep.subr.mxu0 0.0
    %36 = vmatpush1.msra.mxu0 0.0
    %37 = vmatprep.subr.mxu0 0.0
    %38 = vmatpush1.msra.mxu0 0.0
    %39 = vmatprep.subr.mxu0 0.0
    %40 = vmatpush1.msra.mxu0 0.0
    %41 = vmatprep.subr.mxu0 0.0
    %42 = vmatpush1.msra.mxu0 0.0
    %43 = vmatprep.subr.mxu0 0.0
    %44 = vmatpush1.msra.mxu0 0.0
    %45 = vmatprep.subr.mxu0 0.0
    %46 = vmatpush1.msra.mxu0 0.0
    %47 = vmatprep.subr.mxu0 0.0
    %48 = vmatpush1.msra.mxu0 0.0
    %49 = vmatprep.subr.mxu0 0.0
    %50 = vmatpush1.msra.mxu0 0.0
    %51 = vmatprep.subr.mxu0 0.0
    %52 = vmatpush1.msra.mxu0 0.0
    %53 = vmatprep.subr.mxu0 0.0
    %54 = vmatpush1.msra.mxu0 0.0
    %55 = vmatprep.subr.mxu0 0.0
    %56 = vmatpush1.msra.mxu0 0.0
    %57 = vmatprep.subr.mxu0 0.0
    %58 = vmatpush1.msra.mxu0 0.0
    %59 = vmatprep.subr.mxu0 0.0
    %60 = vmatpush1.msra.mxu0 0.0
    %61 = vmatprep.subr.mxu0 0.0
    %62 = vmatpush1.msra.mxu0 0.0
    %63 = vmatprep.subr.mxu0 0.0
    %64 = vmatpush1.msra.mxu0 0.0
    %65 = vmatprep.subr.mxu0 0.0
    %66 = vmatpush1.msra.mxu0 0.0
    %67 = vmatprep.subr.mxu0 0.0
    %68 = vmatpush1.msra.mxu0 0.0
    %69 = vmatprep.subr.mxu0 0.0
    %70 = vmatpush1.msra.mxu0 0.0
    %71 = vmatprep.subr.mxu0 0.0
    %72 = vmatpush1.msra.mxu0 0.0
    %73 = vmatprep.subr.mxu0 0.0
    %74 = vmatpush1.msra.mxu0 0.0
    %75 = vmatprep.subr.mxu0 0.0
    %76 = vmatpush1.msra.mxu0 0.0
    %77 = vmatprep.subr.mxu0 0.0
    %78 = vmatpush1.msra.mxu0 0.0
    %79 = vmatprep.subr.mxu0 0.0
    %80 = vmatpush1.msra.mxu0 0.0
    %81 = vmatprep.subr.mxu0 0.0
    %82 = vmatpush1.msra.mxu0 0.0
    %83 = vmatprep.mubr.f32.mxu0 0.0
    %84 = vmatmul.mubr.f32.gmra.mrb[0].mxu0 %v17
    %v85 = vpop.f32.mrb[0].mxu0
    %v86 = vadd.f32 %v13, %v85
    %v87 = vpop.f32.mrb[0].mxu0
    %88 = vdwg.mxu0
    %v89 = vtanh.pop %v86
    %v91 = vsel %vm15, %v89, 0
    %93 = vmatprep.subr.mxu0 0.0
    %94 = vmatpush1.msra.mxu0 %v9
    %95 = vmatprep.subr.mxu0 0.0
    %96 = vmatpush1.msra.mxu0 0.0
    %97 = vmatprep.subr.mxu0 0.0
    %98 = vmatpush1.msra.mxu0 0.0
    %99 = vmatprep.subr.mxu0 0.0
    %100 = vmatpush1.msra.mxu0 0.0
    %101 = vmatprep.subr.mxu0 0.0
    %102 = vmatpush1.msra.mxu0 0.0
    %103 = vmatprep.subr.mxu0 0.0
    %104 = vmatpush1.msra.mxu0 0.0
    %105 = vmatprep.subr.mxu0 0.0
    %106 = vmatpush1.msra.mxu0 0.0
    %107 = vmatprep.subr.mxu0 0.0
    %108 = vmatpush1.msra.mxu0 0.0
    %109 = vmatprep.subr.mxu0 0.0
    %110 = vmatpush1.msra.mxu0 0.0
    %111 = vmatprep.subr.mxu0 0.0
    %112 = vmatpush1.msra.mxu0 0.0
    %113 = vmatprep.subr.mxu0 0.0
    %114 = vmatpush1.msra.mxu0 0.0
    %115 = vmatprep.subr.mxu0 0.0
    %116 = vmatpush1.msra.mxu0 0.0
    %117 = vmatprep.subr.mxu0 0.0
    %118 = vmatpush1.msra.mxu0 0.0
    %119 = vmatprep.subr.mxu0 0.0
    %120 = vmatpush1.msra.mxu0 0.0
    %121 = vmatprep.subr.mxu0 0.0
    %122 = vmatpush1.msra.mxu0 0.0
    %123 = vmatprep.subr.mxu0 0.0
    %124 = vmatpush1.msra.mxu0 0.0
    %125 = vmatprep.subr.mxu0 0.0
    %126 = vmatpush1.msra.mxu0 0.0
    %127 = vmatprep.subr.mxu0 0.0
    %128 = vmatpush1.msra.mxu0 0.0
    %129 = vmatprep.subr.mxu0 0.0
    %130 = vmatpush1.msra.mxu0 0.0
    %131 = vmatprep.subr.mxu0 0.0
    %132 = vmatpush1.msra.mxu0 0.0
    %133 = vmatprep.subr.mxu0 0.0
    %134 = vmatpush1.msra.mxu0 0.0
    %135 = vmatprep.subr.mxu0 0.0
    %136 = vmatpush1.msra.mxu0 0.0
    %137 = vmatprep.subr.mxu0 0.0
    %138 = vmatpush1.msra.mxu0 0.0
    %139 = vmatprep.subr.mxu0 0.0
    %140 = vmatpush1.msra.mxu0 0.0
    %141 = vmatprep.subr.mxu0 0.0
    %142 = vmatpush1.msra.mxu0 0.0
    %143 = vmatprep.subr.mxu0 0.0
    %144 = vmatpush1.msra.mxu0 0.0
    %145 = vmatprep.subr.mxu0 0.0
    %146 = vmatpush1.msra.mxu0 0.0
    %147 = vmatprep.subr.mxu0 0.0
    %148 = vmatpush1.msra.mxu0 0.0
    %149 = vmatprep.subr.mxu0 0.0
    %150 = vmatpush1.msra.mxu0 0.0
    %151 = vmatprep.subr.mxu0 0.0
    %152 = vmatpush1.msra.mxu0 0.0
    %153 = vmatprep.subr.mxu0 0.0
    %154 = vmatpush1.msra.mxu0 0.0
    %155 = vmatprep.subr.mxu0 0.0
    %156 = vmatpush1.msra.mxu0 0.0
    %157 = vmatprep.mubr.f32.mxu0 0.0
    %158 = vmatmul.mubr.f32.gmra.mrb[0].mxu0 %v91
    %v159 = vpop.f32.mrb[0].mxu0
    %v160 = vadd.f32 %v13, %v159
    %v161 = vpop.f32.mrb[0].mxu0
    %162 = vdwg.mxu0
    %v163 = vtanh.pop %v160
    %v165 = vsel %vm15, %v163, 0
    %167 = vmatprep.subr.mxu0 0.0
    %168 = vmatpush1.msra.mxu0 %v9
    %169 = vmatprep.subr.mxu0 0.0
    %170 = vmatpush1.msra.mxu0 0.0
    %171 = vmatprep.subr.mxu0 0.0
    %172 = vmatpush1.msra.mxu0 0.0
    %173 = vmatprep.subr.mxu0 0.0
    %174 = vmatpush1.msra.mxu0 0.0
    %175 = vmatprep.subr.mxu0 0.0
    %176 = vmatpush1.msra.mxu0 0.0
    %177 = vmatprep.subr.mxu0 0.0
    %178 = vmatpush1.msra.mxu0 0.0
    %179 = vmatprep.subr.mxu0 0.0
    %180 = vmatpush1.msra.mxu0 0.0
    %181 = vmatprep.subr.mxu0 0.0
    %182 = vmatpush1.msra.mxu0 0.0
    %183 = vmatprep.subr.mxu0 0.0
    %184 = vmatpush1.msra.mxu0 0.0
    %185 = vmatprep.subr.mxu0 0.0
    %186 = vmatpush1.msra.mxu0 0.0
    %187 = vmatprep.subr.mxu0 0.0
    %188 = vmatpush1.msra.mxu0 0.0
    %189 = vmatprep.subr.mxu0 0.0
    %190 = vmatpush1.msra.mxu0 0.0
    %191 = vmatprep.subr.mxu0 0.0
    %192 = vmatpush1.msra.mxu0 0.0
    %193 = vmatprep.subr.mxu0 0.0
    %194 = vmatpush1.msra.mxu0 0.0
    %195 = vmatprep.subr.mxu0 0.0
    %196 = vmatpush1.msra.mxu0 0.0
    %197 = vmatprep.subr.mxu0 0.0
    %198 = vmatpush1.msra.mxu0 0.0
    %199 = vmatprep.subr.mxu0 0.0
    %200 = vmatpush1.msra.mxu0 0.0
    %201 = vmatprep.subr.mxu0 0.0
    %202 = vmatpush1.msra.mxu0 0.0
    %203 = vmatprep.subr.mxu0 0.0
    %204 = vmatpush1.msra.mxu0 0.0
    %205 = vmatprep.subr.mxu0 0.0
    %206 = vmatpush1.msra.mxu0 0.0
    %207 = vmatprep.subr.mxu0 0.0
    %208 = vmatpush1.msra.mxu0 0.0
    %209 = vmatprep.subr.mxu0 0.0
    %210 = vmatpush1.msra.mxu0 0.0
    %211 = vmatprep.subr.mxu0 0.0
    %212 = vmatpush1.msra.mxu0 0.0
    %213 = vmatprep.subr.mxu0 0.0
    %214 = vmatpush1.msra.mxu0 0.0
    %215 = vmatprep.subr.mxu0 0.0
    %216 = vmatpush1.msra.mxu0 0.0
    %217 = vmatprep.subr.mxu0 0.0
    %218 = vmatpush1.msra.mxu0 0.0
    %219 = vmatprep.subr.mxu0 0.0
    %220 = vmatpush1.msra.mxu0 0.0
    %221 = vmatprep.subr.mxu0 0.0
    %222 = vmatpush1.msra.mxu0 0.0
    %223 = vmatprep.subr.mxu0 0.0
    %224 = vmatpush1.msra.mxu0 0.0
    %225 = vmatprep.subr.mxu0 0.0
    %226 = vmatpush1.msra.mxu0 0.0
    %227 = vmatprep.subr.mxu0 0.0
    %228 = vmatpush1.msra.mxu0 0.0
    %229 = vmatprep.subr.mxu0 0.0
    %230 = vmatpush1.msra.mxu0 0.0
    %231 = vmatprep.mubr.f32.mxu0 0.0
    %232 = vmatmul.mubr.f32.gmra.mrb[0].mxu0 %v165
    %v233 = vpop.f32.mrb[0].mxu0
    %v234 = vadd.f32 %v13, %v233
    %v235 = vpop.f32.mrb[0].mxu0
    %236 = vdwg.mxu0
    %v237 = vtanh.pop %v234
    %v239 = vsel %vm15, %v237, 0
    %241 = vmatprep.subr.mxu0 0.0
    %242 = vmatpush1.msra.mxu0 %v9
    %243 = vmatprep.subr.mxu0 0.0
    %244 = vmatpush1.msra.mxu0 0.0
    %245 = vmatprep.subr.mxu0 0.0
    %246 = vmatpush1.msra.mxu0 0.0
    %247 = vmatprep.subr.mxu0 0.0
    %248 = vmatpush1.msra.mxu0 0.0
    %249 = vmatprep.subr.mxu0 0.0
    %250 = vmatpush1.msra.mxu0 0.0
    %251 = vmatprep.subr.mxu0 0.0
    %252 = vmatpush1.msra.mxu0 0.0
    %253 = vmatprep.subr.mxu0 0.0
    %254 = vmatpush1.msra.mxu0 0.0
    %255 = vmatprep.subr.mxu0 0.0
    %256 = vmatpush1.msra.mxu0 0.0
    %257 = vmatprep.subr.mxu0 0.0
    %258 = vmatpush1.msra.mxu0 0.0
    %259 = vmatprep.subr.mxu0 0.0
    %260 = vmatpush1.msra.mxu0 0.0
    %261 = vmatprep.subr.mxu0 0.0
    %262 = vmatpush1.msra.mxu0 0.0
    %263 = vmatprep.subr.mxu0 0.0
    %264 = vmatpush1.msra.mxu0 0.0
    %265 = vmatprep.subr.mxu0 0.0
    %266 = vmatpush1.msra.mxu0 0.0
    %267 = vmatprep.subr.mxu0 0.0
    %268 = vmatpush1.msra.mxu0 0.0
    %269 = vmatprep.subr.mxu0 0.0
    %270 = vmatpush1.msra.mxu0 0.0
    %271 = vmatprep.subr.mxu0 0.0
    %272 = vmatpush1.msra.mxu0 0.0
    %273 = vmatprep.subr.mxu0 0.0
    %274 = vmatpush1.msra.mxu0 0.0
    %275 = vmatprep.subr.mxu0 0.0
    %276 = vmatpush1.msra.mxu0 0.0
    %277 = vmatprep.subr.mxu0 0.0
    %278 = vmatpush1.msra.mxu0 0.0
    %279 = vmatprep.subr.mxu0 0.0
    %280 = vmatpush1.msra.mxu0 0.0
    %281 = vmatprep.subr.mxu0 0.0
    %282 = vmatpush1.msra.mxu0 0.0
    %283 = vmatprep.subr.mxu0 0.0
    %284 = vmatpush1.msra.mxu0 0.0
    %285 = vmatprep.subr.mxu0 0.0
    %286 = vmatpush1.msra.mxu0 0.0
    %287 = vmatprep.subr.mxu0 0.0
    %288 = vmatpush1.msra.mxu0 0.0
    %289 = vmatprep.subr.mxu0 0.0
    %290 = vmatpush1.msra.mxu0 0.0
    %291 = vmatprep.subr.mxu0 0.0
    %292 = vmatpush1.msra.mxu0 0.0
    %293 = vmatprep.subr.mxu0 0.0
    %294 = vmatpush1.msra.mxu0 0.0
    %295 = vmatprep.subr.mxu0 0.0
    %296 = vmatpush1.msra.mxu0 0.0
    %297 = vmatprep.subr.mxu0 0.0
    %298 = vmatpush1.msra.mxu0 0.0
    %299 = vmatprep.subr.mxu0 0.0
    %300 = vmatpush1.msra.mxu0 0.0
    %301 = vmatprep.subr.mxu0 0.0
    %302 = vmatpush1.msra.mxu0 0.0
    %303 = vmatprep.subr.mxu0 0.0
    %304 = vmatpush1.msra.mxu0 0.0
    %305 = vmatprep.mubr.f32.mxu0 0.0
    %306 = vmatmul.mubr.f32.gmra.mrb[0].mxu0 %v239
    %v307 = vpop.f32.mrb[0].mxu0
    %v308 = vadd.f32 %v13, %v307
    %v309 = vpop.f32.mrb[0].mxu0
    %310 = vdwg.mxu0
    %v311 = vtanh.pop %v308
    %v312 = vrot.slane %v89, 7
    %v314 = vrot.slane %v163, 6
    %v316 = vrot.slane %v237, 5
    %v319 = vrot.slane %v311, 4
    %vm321 = vcmask 1040384
    %v322 = vsel %vm321, %v11, %v312
    %vm323 = vcmask 1041408
    %v324 = vsel %vm323, %v322, %v314
    %vm325 = vcmask 1042432
    %v326 = vsel %vm325, %v324, %v316
    %vm327 = vcmask 1043456
    %v328 = vsel %vm327, %v326, %v319
    %vm329 = vcmask 61440
    %330 = vst.msk [vmem:[#allocation2] sm:$0x1f] %vm329, %v328
    // Predicated region
    $region6: #{_run_rnn_kernel.1} parent=1 // pred_check
      _
    $region7: #{_run_rnn_kernel.1} parent=1 // pred_check_branch
      %332 = sbr.rel (0) target = $region9
    $region8: #{_run_rnn_kernel.1} parent=1 // pred_region
      %s334 = ssub.s32 128, 128
      %335 = vsyncadd [#allocation3], %s334
      %s337 = sshll.u32 [#allocation2], 4
      %s338 = int_to_ptr.vmem [resolvable:$true] %s337
      %340 = dma.vmem_to_hbm [thread:$0]  %s338, 128, %s1, [#allocation3]
    $region9: #{_run_rnn_kernel.1} parent=1 // pred_fallthru
      _
    // Predicated region
    $region10: #{_run_rnn_kernel.1} parent=1 // pred_check
      _
    $region11: #{_run_rnn_kernel.1} parent=1 // pred_check_branch
      %342 = sbr.rel (0) target = $region13
    $region12: #{_run_rnn_kernel.1} parent=1 // pred_region
      %343 = dma.done [#allocation3], 128
    $region13: #{_run_rnn_kernel.1} parent=1 // pred_fallthru
      _
    %344 = vsyncpa [#allocation3], 1

</llo_original>
